<compile_context>
chip_gen: v6e
topology: v6e:2x2x1
jax: 0.10.0
libtpu: 0.0.40
codegen_flags: <defaults>
</compile_context>

<pallas_src>
import functools

import jax
import jax.numpy as jnp
from jax.experimental import pallas as pl
from jax.experimental.pallas import tpu as pltpu


def _round_up(x: int, m: int) -> int:
    return ((x + m - 1) // m) * m


# ----------------------------- kernel body --------------------------------
def _ffn_kernel(x_ref, wg_ref, w2_ref, o_ref, acc_ref):
    """One (token-tile i, hidden-tile n) step:
    h = x @ [w1_n | w3_n]            (single fused MXU pass, f32 out)
    acc += (silu(h1) * h3) @ w2_n    (f32 accumulate)
    """
    n = pl.program_id(1)

    @pl.when(n == 0)
    def _init():
        acc_ref[...] = jnp.zeros_like(acc_ref)

    tn = w2_ref.shape[0]                               # hidden tile (static)
    x = x_ref[...]                                     # (tm, dim), native dtype
    h = jnp.dot(x, wg_ref[...], preferred_element_type=jnp.float32)  # (tm, 2*tn)
    h1 = h[:, :tn]                                     # lane-aligned split
    h3 = h[:, tn:]
    # SwiGLU gate in f32 (VPU mul + EUP sigmoid).
    g = h1 * jax.nn.sigmoid(h1) * h3                   # (tm, tn) f32
    # Cast gate to the weight dtype so the 2nd matmul runs the MXU at full
    # (bf16) rate; accumulate in f32.
    acc_ref[...] += jnp.dot(g.astype(w2_ref.dtype), w2_ref[...],
                            preferred_element_type=jnp.float32)

    @pl.when(n == pl.num_programs(1) - 1)
    def _flush():
        o_ref[...] = acc_ref[...].astype(o_ref.dtype)


# -------------------------- generation-aware tiling ------------------------
def _tpu_config():
    """(vmem_capacity_bytes, mxu_align, tm_roofline_target, num_tensorcores)."""
    kind = ""
    try:
        kind = jax.devices()[0].device_kind.lower()
    except Exception:
        pass

    vmem_cap = None
    try:
        info = pltpu.get_tpu_info()
        for attr in ("vmem_capacity_bytes", "vmem_size_bytes", "vmem_bytes"):
            v = getattr(info, attr, None)
            if v:
                vmem_cap = int(v)
                break
    except Exception:
        vmem_cap = None
    if not vmem_cap:
        vmem_cap = (64 << 20) if "v7" in kind else (128 << 20)

    if "v7" in kind:                       # 2 TC/chip, 64 MiB VMEM/TC, 256x256 MXU
        return vmem_cap, 256, 768, 2
    if "v6" in kind:                       # 128 MiB VMEM, 256x256 MXU, ~650 rows to roofline
        return vmem_cap, 256, 768, 1
    if "v5e" in kind or "v5 lite" in kind or "v5lite" in kind:
        return vmem_cap, 128, 256, 1       # lower roofline (~240 rows), 128x128 MXU
    return vmem_cap, 128, 512, 1           # conservative default


def _choose_tm(tokens: int, dim: int, tn: int, x_elt: int, w_elt: int, cfg) -> int:
    vmem_cap, align, tm_target, num_tc = cfg
    budget = int(0.82 * vmem_cap)          # leave headroom for compiler scratch

    def usage(tm):
        # double-buffered x/out tiles + double-buffered wg/w2 tiles
        # + resident f32 accumulator + rough f32 intermediates (h, g).
        return (4 * tm * dim * x_elt
                + 6 * dim * tn * w_elt
                + 4 * tm * dim
                + 12 * tm * tn)

    if tokens <= align:
        tm = max(8, _round_up(tokens, 8))
    else:
        # Largest MXU-aligned tile <= roofline target that fits the VMEM budget.
        tm = _round_up(min(tm_target, tokens), align)
        while tm > align and usage(tm) > budget:
            tm -= align

    # Multi-TensorCore guard: keep >= 2 token tiles so both cores get work.
    n_tiles = max(pl.cdiv(tokens, tm),
                  2 if (num_tc >= 2 and tokens >= 256) else 1)
    # Rebalance so the final tile is not mostly padding.
    if tokens > align:
        tm = _round_up(pl.cdiv(tokens, n_tiles), align)
    elif n_tiles > 1:
        tm = max(8, _round_up(pl.cdiv(tokens, n_tiles), 8))
    while tm > align and usage(tm) > budget:
        tm -= align
    return tm


# ------------------------------ weight prep --------------------------------
def prepare_weights(w1, w2, w3, tn: int = 512):
    """One-time layout prep (do at parameter-load time, NOT per call):
      * torch (out, in) -> (in, out) row-major for the MXU,
      * zero-pad hidden to a multiple of the hidden tile `tn`,
      * fuse w1/w3 into one tile-interleaved gate weight
        [w1_tile0 | w3_tile0 | w1_tile1 | w3_tile1 | ...]
        so each grid step fetches ONE weight block and does ONE MXU pass on x.
    Returns (wg, w2_t, tn_eff):
      wg   : (dim, 2*hidden_pad)
      w2_t : (hidden_pad, dim)
      tn_eff : hidden tile size to pass to feed_forward (static).
    """
    hidden, dim = w1.shape
    tn_eff = int(min(tn, _round_up(hidden, 128)))
    tn_eff = max(128, (tn_eff // 128) * 128)
    hidden_pad = _round_up(hidden, tn_eff)
    pad = hidden_pad - hidden

    w1_t = jnp.transpose(w1)               # (dim, hidden)
    w3_t = jnp.transpose(w3)
    w2_t = jnp.transpose(w2)               # (hidden, dim)
    if pad:
        w1_t = jnp.pad(w1_t, ((0, 0), (0, pad)))
        w3_t = jnp.pad(w3_t, ((0, 0), (0, pad)))
        w2_t = jnp.pad(w2_t, ((0, pad), (0, 0)))

    nt = hidden_pad // tn_eff
    wg = jnp.stack([w1_t.reshape(dim, nt, tn_eff),
                    w3_t.reshape(dim, nt, tn_eff)], axis=2)    # (dim, nt, 2, tn)
    wg = wg.reshape(dim, 2 * hidden_pad)
    return wg, w2_t, tn_eff


# ------------------------------ entry point ---------------------------------
@functools.partial(jax.jit, static_argnames=("tn",))
def feed_forward(x, wg, w2_t, *, tn):
    """x: (..., dim). wg: (dim, 2*hidden_pad) fused gate weight (see
    prepare_weights). w2_t: (hidden_pad, dim). tn: hidden tile (static).

    Equivalent to dropout(w2(silu(w1(x)) * w3(x))) in eval mode (dropout is
    identity).  Returns the same leading shape as x.
    """
    orig_shape = x.shape
    dim = x.shape[-1]
    hidden_pad = w2_t.shape[0]
    assert wg.shape == (dim, 2 * hidden_pad), (wg.shape, dim, hidden_pad)
    assert hidden_pad % tn == 0

    x2d = x.reshape(-1, dim)
    tokens = x2d.shape[0]

    cfg = _tpu_config()
    vmem_cap = cfg[0]
    x_elt = x2d.dtype.itemsize
    w_elt = wg.dtype.itemsize

    tm = _choose_tm(tokens, dim, tn, x_elt, w_elt, cfg)
    tokens_pad = _round_up(tokens, tm)
    if tokens_pad != tokens:
        x2d = jnp.pad(x2d, ((0, tokens_pad - tokens), (0, 0)))

    grid = (tokens_pad // tm, hidden_pad // tn)
    n_token_tiles = grid[0]

    # Honest HBM traffic: weights are re-streamed once per token tile.
    cost = pl.CostEstimate(
        flops=6 * tokens_pad * dim * hidden_pad,
        transcendentals=tokens_pad * hidden_pad,
        bytes_accessed=(2 * tokens_pad * dim * x_elt
                        + n_token_tiles * 3 * dim * hidden_pad * w_elt),
    )

    # VMEM limit derived from the chip's actual capacity (no hard 64 MiB cap).
    vmem_limit = max(int(0.90 * vmem_cap), 16 << 20)

    out = pl.pallas_call(
        _ffn_kernel,
        out_shape=jax.ShapeDtypeStruct((tokens_pad, dim), x.dtype),
        grid_spec=pltpu.PrefetchScalarGridSpec(
            num_scalar_prefetch=0,
            grid=grid,
            in_specs=[
                pl.BlockSpec((tm, dim), lambda i, n: (i, 0)),        # x
                pl.BlockSpec((dim, 2 * tn), lambda i, n: (0, n)),    # fused w1|w3
                pl.BlockSpec((tn, dim), lambda i, n: (n, 0)),        # w2
            ],
            out_specs=pl.BlockSpec((tm, dim), lambda i, n: (i, 0)),
            scratch_shapes=[pltpu.VMEM((tm, dim), jnp.float32)],
        ),
        compiler_params=pltpu.CompilerParams(
            dimension_semantics=("parallel", "arbitrary"),
            vmem_limit_bytes=vmem_limit,
        ),
        cost_estimate=cost,
    )(x2d, wg, w2_t)

    if tokens_pad != tokens:
        out = out[:tokens]
    return out.reshape(orig_shape)


# ------------------------------ reference ----------------------------------
def _reference(x, w1, w2, w3):
    """Pure-JAX f32 reference; weights in torch (out, in) layout."""
    x = x.astype(jnp.float32)
    w1 = w1.astype(jnp.float32)
    w2 = w2.astype(jnp.float32)
    w3 = w3.astype(jnp.float32)
    h1 = x @ w1.T
    h3 = x @ w3.T
    return ((h1 * jax.nn.sigmoid(h1)) * h3) @ w2.T


if __name__ == "__main__":
    key = jax.random.PRNGKey(0)

    # --- Test 1: module config from the spec (small, f32) -------------------
    # dim=32, hidden_dim=None -> 4*32=128 -> 2/3 -> 85 -> round up to 32 -> 96.
    dim = 32
    multiple_of = 32
    hidden_dim = 4 * dim
    hidden_dim = int(2 * hidden_dim / 3)
    hidden_dim = multiple_of * ((hidden_dim + multiple_of - 1) // multiple_of)  # 96

    batch, seq = 2, 8
    kx, k1, k2, k3, k4 = jax.random.split(key, 5)

    x = jax.random.normal(kx, (batch, seq, dim), dtype=jnp.float32)
    # nn.Linear-like init (bias=False), torch layout (out_features, in_features).
    w1 = jax.random.normal(k1, (hidden_dim, dim), dtype=jnp.float32) / jnp.sqrt(dim)
    w3 = jax.random.normal(k3, (hidden_dim, dim), dtype=jnp.float32) / jnp.sqrt(dim)
    w2 = jax.random.normal(k2, (dim, hidden_dim), dtype=jnp.float32) / jnp.sqrt(hidden_dim)

    # One-time weight layout change / fusion (outside the jitted call path).
    wg, w2p, tn = prepare_weights(w1, w2, w3)

    out = jax.block_until_ready(feed_forward(x, wg, w2p, tn=tn))
    ref = _reference(x.reshape(-1, dim), w1, w2, w3).reshape(batch, seq, dim)
    assert out.shape == (batch, seq, dim), out.shape
    assert jnp.allclose(out, ref, atol=1e-4, rtol=1e-4), \
        float(jnp.max(jnp.abs(out - ref)))

    # --- Test 2: bf16, non-multiple token count (exercises token padding and
    #             the 2-step hidden accumulation) ----------------------------
    dim2, hidden2, tokens2 = 256, 1024, 203
    kx2, k12, k22, k32 = jax.random.split(k4, 4)
    x2 = jax.random.normal(kx2, (tokens2, dim2), dtype=jnp.bfloat16)
    w1b = (jax.random.normal(k12, (hidden2, dim2), jnp.float32) / jnp.sqrt(dim2)).astype(jnp.bfloat16)
    w3b = (jax.random.normal(k32, (hidden2, dim2), jnp.float32) / jnp.sqrt(dim2)).astype(jnp.bfloat16)
    w2b = (jax.random.normal(k22, (dim2, hidden2), jnp.float32) / jnp.sqrt(hidden2)).astype(jnp.bfloat16)

    wgb, w2bp, tn2 = prepare_weights(w1b, w2b, w3b)
    out2 = jax.block_until_ready(feed_forward(x2, wgb, w2bp, tn=tn2))
    ref2 = _reference(x2, w1b, w2b, w3b)
    assert out2.shape == (tokens2, dim2), out2.shape
    assert jnp.allclose(out2.astype(jnp.float32), ref2, atol=5e-2, rtol=5e-2), \
        float(jnp.max(jnp.abs(out2.astype(jnp.float32) - ref2)))

    print("KERNEL_OK")
</pallas_src>

<mosaic_0001>
module attributes {stable_mosaic.version = 11 : i64} {
  func.func @_ffn_kernel(%arg0: i32, %arg1: i32, %arg2: memref<16x32xf32, #tpu.memory_space<vmem>>, %arg3: memref<32x256xf32, #tpu.memory_space<vmem>>, %arg4: memref<128x32xf32, #tpu.memory_space<vmem>>, %arg5: memref<16x32xf32, #tpu.memory_space<vmem>>, %arg6: memref<16x32xf32, #tpu.memory_space<vmem>>) attributes {dimension_semantics = [#tpu.dimension_semantics<parallel>, #tpu.dimension_semantics<arbitrary>], iteration_bounds = array<i64: 1, 1>, scalar_prefetch = 0 : i64, scratch_operands = 1 : i64, tpu.core_type = #tpu.core_type<tc>, window_params = [{transform_indices = @transform_0, window_bounds = array<i64: 16, 32>}, {transform_indices = @transform_1, window_bounds = array<i64: 32, 256>}, {transform_indices = @transform_2, window_bounds = array<i64: 128, 32>}, {transform_indices = @transform_3, window_bounds = array<i64: 16, 32>}]} {
    %c0_i32 = arith.constant 0 : i32
    %0 = arith.cmpi eq, %arg1, %c0_i32 : i32
    %1 = arith.extui %0 : i1 to i32
    %c0_i32_0 = arith.constant 0 : i32
    %2 = arith.cmpi ne, %1, %c0_i32_0 : i32
    scf.if %2 {
      %cst_14 = arith.constant 0.000000e+00 : f32
      %23 = vector.broadcast %cst_14 : f32 to vector<16x32xf32>
      %c0_15 = arith.constant 0 : index
      %c0_16 = arith.constant 0 : index
      %24 = vector.load %arg6[%c0_15, %c0_16] : memref<16x32xf32, #tpu.memory_space<vmem>>, vector<16x32xf32>
      tpu.vector_store %arg6[%c0_15, %c0_16], %23 {strides = array<i32>} : memref<16x32xf32, #tpu.memory_space<vmem>>, vector<16x32xf32>,
    } else {
    }
    %c0 = arith.constant 0 : index
    %c0_1 = arith.constant 0 : index
    %3 = vector.load %arg2[%c0, %c0_1] : memref<16x32xf32, #tpu.memory_space<vmem>>, vector<16x32xf32>
    %c0_2 = arith.constant 0 : index
    %c0_3 = arith.constant 0 : index
    %4 = vector.load %arg3[%c0_2, %c0_3] : memref<32x256xf32, #tpu.memory_space<vmem>>, vector<32x256xf32>
    %cst = arith.constant dense<0.000000e+00> : vector<16x256xf32>
    %5 = tpu.matmul %3, %4, %cst {dimension_numbers = #tpu.dot_dimension_numbers<[1], [0], [0], [1], [0, 0, 1, 1], [], []>} : vector<16x32xf32>, vector<32x256xf32>, vector<16x256xf32> -> vector<16x256xf32>
    %6 = vector.extract_strided_slice %5 {offsets = [0, 0], sizes = [16, 128], strides = [1, 1]} : vector<16x256xf32> to vector<16x128xf32>
    %7 = vector.extract_strided_slice %5 {offsets = [0, 128], sizes = [16, 128], strides = [1, 1]} : vector<16x256xf32> to vector<16x128xf32>
    %8 = arith.negf %6 : vector<16x128xf32>
    %9 = math.exp %8 : vector<16x128xf32>
    %cst_4 = arith.constant 1.000000e+00 : f32
    %10 = vector.broadcast %cst_4 : f32 to vector<16x128xf32>
    %11 = arith.addf %10, %9 : vector<16x128xf32>
    %12 = arith.divf %10, %11 : vector<16x128xf32>
    %13 = arith.mulf %6, %12 : vector<16x128xf32>
    %14 = arith.mulf %13, %7 : vector<16x128xf32>
    %c0_5 = arith.constant 0 : index
    %c0_6 = arith.constant 0 : index
    %15 = vector.load %arg6[%c0_5, %c0_6] : memref<16x32xf32, #tpu.memory_space<vmem>>, vector<16x32xf32>
    %c0_7 = arith.constant 0 : index
    %c0_8 = arith.constant 0 : index
    %16 = vector.load %arg4[%c0_7, %c0_8] : memref<128x32xf32, #tpu.memory_space<vmem>>, vector<128x32xf32>
    %cst_9 = arith.constant dense<0.000000e+00> : vector<16x32xf32>
    %17 = tpu.matmul %14, %16, %cst_9 {dimension_numbers = #tpu.dot_dimension_numbers<[1], [0], [0], [1], [0, 0, 1, 1], [], []>} : vector<16x128xf32>, vector<128x32xf32>, vector<16x32xf32> -> vector<16x32xf32>
    %18 = arith.addf %15, %17 : vector<16x32xf32>
    %c0_10 = arith.constant 0 : index
    %c0_11 = arith.constant 0 : index
    %19 = vector.load %arg6[%c0_10, %c0_11] : memref<16x32xf32, #tpu.memory_space<vmem>>, vector<16x32xf32>
    tpu.vector_store %arg6[%c0_10, %c0_11], %18 {strides = array<i32>} : memref<16x32xf32, #tpu.memory_space<vmem>>, vector<16x32xf32>,
    %c0_i32_12 = arith.constant 0 : i32
    %20 = arith.cmpi eq, %arg1, %c0_i32_12 : i32
    %21 = arith.extui %20 : i1 to i32
    %c0_i32_13 = arith.constant 0 : i32
    %22 = arith.cmpi ne, %21, %c0_i32_13 : i32
    scf.if %22 {
      %c0_14 = arith.constant 0 : index
      %c0_15 = arith.constant 0 : index
      %23 = vector.load %arg6[%c0_14, %c0_15] : memref<16x32xf32, #tpu.memory_space<vmem>>, vector<16x32xf32>
      %c0_16 = arith.constant 0 : index
      %c0_17 = arith.constant 0 : index
      %24 = vector.load %arg5[%c0_16, %c0_17] : memref<16x32xf32, #tpu.memory_space<vmem>>, vector<16x32xf32>
      tpu.vector_store %arg5[%c0_16, %c0_17], %23 {strides = array<i32>} : memref<16x32xf32, #tpu.memory_space<vmem>>, vector<16x32xf32>,
    } else {
    }
    return
  }
  func.func @transform_0(%arg0: i32, %arg1: i32) -> (i32, i32) {
    %c0_i32 = arith.constant 0 : i32
    %c0_i32_0 = arith.constant 0 : i32
    return %arg0, %c0_i32 : i32, i32
  }
  func.func @transform_1(%arg0: i32, %arg1: i32) -> (i32, i32) {
    %c0_i32 = arith.constant 0 : i32
    %c0_i32_0 = arith.constant 0 : i32
    return %c0_i32, %arg1 : i32, i32
  }
  func.func @transform_2(%arg0: i32, %arg1: i32) -> (i32, i32) {
    %c0_i32 = arith.constant 0 : i32
    %c0_i32_0 = arith.constant 0 : i32
    return %arg1, %c0_i32 : i32, i32
  }
  func.func @transform_3(%arg0: i32, %arg1: i32) -> (i32, i32) {
    %c0_i32 = arith.constant 0 : i32
    %c0_i32_0 = arith.constant 0 : i32
    return %arg0, %c0_i32 : i32, i32
  }
}

</mosaic_0001>

<llo_original>
// kernel: feed_forward.1
$region0: #{feed_forward.1}
  #allocation0 [shape = 'u32[]', space=smem, size = 0x4, offset = 0x4, fixed_abs, tag = 'smem constant byte address 0x4 - core index']
  #allocation1 [shape = 'u32[144,128]{1,0:T(1,128)}', space=vmem, size = 0x12000, scoped, tag = 'internal scratch']
  #allocation2 [shape = 'f32[16,32]{1,0:T(8,128)}', space=vmem, size = 0x2000, scoped, tag = 'scratch operand']
  %s0 = inlined_call_operand.vmem [shape: f32[16,32], index: 0, kind: input, shape index: {}]
  %s1 = inlined_call_operand.vmem [shape: f32[32,256], index: 1, kind: input, shape index: {}]
  %s2 = inlined_call_operand.vmem [shape: f32[128,32], index: 2, kind: input, shape index: {}]
  %s3 = inlined_call_operand.hbm [shape: f32[16,32], index: 3, kind: output, shape index: {}]
  %s4 = sld [smem:[#allocation0]]
  $region30: #{feed_forward.1} parent=0
    _
  %s6 = ssub.s32 1, %s4
  %s7 = scalar_select 0, %s6, %s4
  $region1: #{feed_forward.1} parent=0
    #allocation3 [shape = 'u8[8192]{0}', space=vmem, size = 0x2000, scoped, tag = 'output window, operand 0, single buffered']
    #allocation4 [shape = 's32[1]{0}', space=sflag, size = 0x4, scoped, tag = 'scoped memory for feed_forward.1']
    %8 = vsyncpa [#allocation4], 0
    // Predicated region
    $region2: #{feed_forward.1} parent=1 // pred_check
      _
    $region3: #{feed_forward.1} parent=1 // pred_check_branch
      %10 = sbr.rel (0) target = $region5
    $region4: #{feed_forward.1} parent=1 // pred_region
      _
    $region5: #{feed_forward.1} parent=1 // pred_fallthru
      _
    // Predicated region
    $region6: #{feed_forward.1} parent=1 // pred_check
      _
    $region7: #{feed_forward.1} parent=1 // pred_check_branch
      %12 = sbr.rel (0) target = $region9
    $region8: #{feed_forward.1} parent=1 // pred_region
      _
    $region9: #{feed_forward.1} parent=1 // pred_fallthru
      _
    // Predicated region
    $region10: #{feed_forward.1} parent=1 // pred_check
      _
    $region11: #{feed_forward.1} parent=1 // pred_check_branch
      %14 = sbr.rel (0) target = $region13
    $region12: #{feed_forward.1} parent=1 // pred_region
      _
    $region13: #{feed_forward.1} parent=1 // pred_fallthru
      _
    %p15 = scmp.eq.s32.totalorder 0, 0
    // Predicated region
    $region14: #{feed_forward.1} parent=1 // pred_check
      %p16 = pneg %p15
    $region15: #{feed_forward.1} parent=1 // pred_check_branch
      %18 = sbr.rel (%p16) target = $region17
    $region16: #{feed_forward.1} parent=1 // pred_region
      %vm19 = vcmask 261120
      %20 = vst.msk [vmem:[#allocation2] sm:$0xff] %vm19, 0.0
      %21 = vst.msk [vmem:[#allocation2 + $0x8] sm:$0xff] %vm19, 0.0
    $region17: #{feed_forward.1} parent=1 // pred_fallthru
      _
    %v22 = vld [vmem:[%s0] sm:$0xff]
    %v23 = vld [vmem:[%s0 + $0x8] sm:$0xff]
    %v24 = vld [vmem:[%s1] sm:$0xff]
    %v25 = vld [vmem:[%s1 + $0x8] sm:$0xff]
    %v26 = vld [vmem:[%s1 + $0x10] sm:$0xff]
    %v27 = vld [vmem:[%s1 + $0x18] sm:$0xff]
    %v28 = vld [vmem:[%s1 + $0x20] sm:$0xff]
    %v29 = vld [vmem:[%s1 + $0x28] sm:$0xff]
    %v30 = vld [vmem:[%s1 + $0x30] sm:$0xff]
    %v31 = vld [vmem:[%s1 + $0x38] sm:$0xff]
    %vm32 = vcmask 261120
    %v34 = vsel %vm32, %v22, 0
    %v37 = vsel %vm32, %v23, 0
    %39 = vmatprep.subr.mxu0 0.0
    %40 = vmatpush1.msra.mxu0 0.0
    %41 = vmatprep.subr.mxu0 0.0
    %42 = vmatpush1.msra.mxu0 0.0
    %43 = vmatprep.subr.mxu0 0.0
    %44 = vmatpush1.msra.mxu0 0.0
    %45 = vmatprep.subr.mxu0 0.0
    %46 = vmatpush1.msra.mxu0 0.0
    %47 = vmatprep.subr.mxu0 0.0
    %48 = vmatpush1.msra.mxu0 0.0
    %49 = vmatprep.subr.mxu0 0.0
    %50 = vmatpush1.msra.mxu0 0.0
    %51 = vmatprep.subr.mxu0 0.0
    %52 = vmatpush1.msra.mxu0 0.0
    %53 = vmatprep.subr.mxu0 0.0
    %54 = vmatpush1.msra.mxu0 0.0
    %55 = vmatprep.subr.mxu0 0.0
    %56 = vmatpush1.msra.mxu0 0.0
    %57 = vmatprep.subr.mxu0 0.0
    %58 = vmatpush1.msra.mxu0 0.0
    %59 = vmatprep.subr.mxu0 0.0
    %60 = vmatpush1.msra.mxu0 0.0
    %61 = vmatprep.subr.mxu0 0.0
    %62 = vmatpush1.msra.mxu0 0.0
    %63 = vmatprep.subr.mxu0 %v31
    %64 = vmatpush1.msra.mxu0 %v30
    %65 = vmatprep.subr.mxu0 %v29
    %66 = vmatpush1.msra.mxu0 %v28
    %67 = vmatprep.subr.mxu0 %v27
    %68 = vmatpush1.msra.mxu0 %v26
    %69 = vmatprep.subr.mxu0 %v25
    %70 = vmatpush1.msra.mxu0 %v24
    %71 = vmatprep.subr.mxu0 0.0
    %72 = vmatpush2.msra.mxu0 0.0
    %73 = vmatprep.subr.mxu0 0.0
    %74 = vmatpush2.msra.mxu0 0.0
    %75 = vmatprep.subr.mxu0 0.0
    %76 = vmatpush2.msra.mxu0 0.0
    %77 = vmatprep.subr.mxu0 0.0
    %78 = vmatpush2.msra.mxu0 0.0
    %79 = vmatprep.subr.mxu0 0.0
    %80 = vmatpush2.msra.mxu0 0.0
    %81 = vmatprep.subr.mxu0 0.0
    %82 = vmatpush2.msra.mxu0 0.0
    %83 = vmatprep.subr.mxu0 0.0
    %84 = vmatpush2.msra.mxu0 0.0
    %85 = vmatprep.subr.mxu0 0.0
    %86 = vmatpush2.msra.mxu0 0.0
    %87 = vmatprep.subr.mxu0 0.0
    %88 = vmatpush2.msra.mxu0 0.0
    %89 = vmatprep.subr.mxu0 0.0
    %90 = vmatpush2.msra.mxu0 0.0
    %91 = vmatprep.subr.mxu0 0.0
    %92 = vmatpush2.msra.mxu0 0.0
    %93 = vmatprep.subr.mxu0 0.0
    %94 = vmatpush2.msra.mxu0 0.0
    %95 = vmatprep.subr.mxu0 0.0
    %96 = vmatpush2.msra.mxu0 0.0
    %97 = vmatprep.subr.mxu0 0.0
    %98 = vmatpush2.msra.mxu0 0.0
    %99 = vmatprep.subr.mxu0 0.0
    %100 = vmatpush2.msra.mxu0 0.0
    %101 = vmatprep.subr.mxu0 0.0
    %102 = vmatpush2.msra.mxu0 0.0
    %103 = vmatprep.mubr.f32.mxu0 0.0
    %104 = vmatmul.mubr.f32.gmra.mxu0 %v34
    %v105 = vpop.f32.mrf.mxu0
    %v106 = vadd.f32 0.0, %v105
    %v107 = vpop.f32.mrf.mxu0
    %v108 = vadd.f32 0.0, %v107
    %109 = vmatprep.mubr.f32.mxu0 0.0
    %110 = vmatmul.mubr.f32.gmra.mxu0 %v37
    %v111 = vpop.f32.mrf.mxu0
    %v112 = vadd.f32 0.0, %v111
    %v113 = vpop.f32.mrf.mxu0
    %v114 = vadd.f32 0.0, %v113
    %115 = vdwg.mxu0
    %v116 = vxor.u32 %v106, 2147483648
    %v117 = vxor.u32 %v112, 2147483648
    %v118 = vmul.f32 %v116, 1.442695
    %v119 = vpow.pop %v118
    %v120 = vmul.f32 %v117, 1.442695
    %v121 = vpow.pop %v120
    %v122 = vadd.f32 %v119, 1.0
    %v123 = vadd.f32 %v121, 1.0
    %v124 = vrcp.pop %v122
    %v125 = vmul.f32 1.0, %v124
    %v126 = vrcp.pop %v123
    %v127 = vmul.f32 1.0, %v126
    %v128 = vmul.f32 %v106, %v125
    %v129 = vmul.f32 %v112, %v127
    %v130 = vmul.f32 %v128, %v108
    %v131 = vmul.f32 %v129, %v114
    %v132 = vld [vmem:[#allocation2] sm:$0xff]
    %v133 = vld [vmem:[#allocation2 + $0x8] sm:$0xff]
    %v134 = vld [vmem:[%s2] sm:$0xff]
    %v135 = vld [vmem:[%s2 + $0x8] sm:$0xff]
    %v136 = vld [vmem:[%s2 + $0x10] sm:$0xff]
    %v137 = vld [vmem:[%s2 + $0x18] sm:$0xff]
    %v138 = vld [vmem:[%s2 + $0x20] sm:$0xff]
    %v139 = vld [vmem:[%s2 + $0x28] sm:$0xff]
    %v140 = vld [vmem:[%s2 + $0x30] sm:$0xff]
    %v141 = vld [vmem:[%s2 + $0x38] sm:$0xff]
    %v142 = vld [vmem:[%s2 + $0x40] sm:$0xff]
    %v143 = vld [vmem:[%s2 + $0x48] sm:$0xff]
    %v144 = vld [vmem:[%s2 + $0x50] sm:$0xff]
    %v145 = vld [vmem:[%s2 + $0x58] sm:$0xff]
    %v146 = vld [vmem:[%s2 + $0x60] sm:$0xff]
    %v147 = vld [vmem:[%s2 + $0x68] sm:$0xff]
    %v148 = vld [vmem:[%s2 + $0x70] sm:$0xff]
    %v149 = vld [vmem:[%s2 + $0x78] sm:$0xff]
    %150 = vmatprep.subr.mxu0 0.0
    %151 = vmatpush1.msra.mxu0 %v149
    %152 = vmatprep.subr.mxu0 0.0
    %153 = vmatpush1.msra.mxu0 %v148
    %154 = vmatprep.subr.mxu0 0.0
    %155 = vmatpush1.msra.mxu0 %v147
    %156 = vmatprep.subr.mxu0 0.0
    %157 = vmatpush1.msra.mxu0 %v146
    %158 = vmatprep.subr.mxu0 0.0
    %159 = vmatpush1.msra.mxu0 %v145
    %160 = vmatprep.subr.mxu0 0.0
    %161 = vmatpush1.msra.mxu0 %v144
    %162 = vmatprep.subr.mxu0 0.0
    %163 = vmatpush1.msra.mxu0 %v143
    %164 = vmatprep.subr.mxu0 0.0
    %165 = vmatpush1.msra.mxu0 %v142
    %166 = vmatprep.subr.mxu0 0.0
    %167 = vmatpush1.msra.mxu0 %v141
    %168 = vmatprep.subr.mxu0 0.0
    %169 = vmatpush1.msra.mxu0 %v140
    %170 = vmatprep.subr.mxu0 0.0
    %171 = vmatpush1.msra.mxu0 %v139
    %172 = vmatprep.subr.mxu0 0.0
    %173 = vmatpush1.msra.mxu0 %v138
    %174 = vmatprep.subr.mxu0 0.0
    %175 = vmatpush1.msra.mxu0 %v137
    %176 = vmatprep.subr.mxu0 0.0
    %177 = vmatpush1.msra.mxu0 %v136
    %178 = vmatprep.subr.mxu0 0.0
    %179 = vmatpush1.msra.mxu0 %v135
    %180 = vmatprep.subr.mxu0 0.0
    %181 = vmatpush1.msra.mxu0 %v134
    %182 = vmatprep.subr.mxu0 0.0
    %183 = vmatpush2.msra.mxu0 0.0
    %184 = vmatprep.subr.mxu0 0.0
    %185 = vmatpush2.msra.mxu0 0.0
    %186 = vmatprep.subr.mxu0 0.0
    %187 = vmatpush2.msra.mxu0 0.0
    %188 = vmatprep.subr.mxu0 0.0
    %189 = vmatpush2.msra.mxu0 0.0
    %190 = vmatprep.subr.mxu0 0.0
    %191 = vmatpush2.msra.mxu0 0.0
    %192 = vmatprep.subr.mxu0 0.0
    %193 = vmatpush2.msra.mxu0 0.0
    %194 = vmatprep.subr.mxu0 0.0
    %195 = vmatpush2.msra.mxu0 0.0
    %196 = vmatprep.subr.mxu0 0.0
    %197 = vmatpush2.msra.mxu0 0.0
    %198 = vmatprep.subr.mxu0 0.0
    %199 = vmatpush2.msra.mxu0 0.0
    %200 = vmatprep.subr.mxu0 0.0
    %201 = vmatpush2.msra.mxu0 0.0
    %202 = vmatprep.subr.mxu0 0.0
    %203 = vmatpush2.msra.mxu0 0.0
    %204 = vmatprep.subr.mxu0 0.0
    %205 = vmatpush2.msra.mxu0 0.0
    %206 = vmatprep.subr.mxu0 0.0
    %207 = vmatpush2.msra.mxu0 0.0
    %208 = vmatprep.subr.mxu0 0.0
    %209 = vmatpush2.msra.mxu0 0.0
    %210 = vmatprep.subr.mxu0 0.0
    %211 = vmatpush2.msra.mxu0 0.0
    %212 = vmatprep.subr.mxu0 0.0
    %213 = vmatpush2.msra.mxu0 0.0
    %214 = vmatprep.mubr.f32.mxu0 0.0
    %215 = vmatmul.mubr.f32.gmra.mxu0 %v130
    %v216 = vpop.f32.mrf.mxu0
    %v217 = vadd.f32 0.0, %v216
    %v218 = vpop.f32.mrf.mxu0
    %219 = vmatprep.mubr.f32.mxu0 0.0
    %220 = vmatmul.mubr.f32.gmra.mxu0 %v131
    %v221 = vpop.f32.mrf.mxu0
    %v222 = vadd.f32 0.0, %v221
    %v223 = vpop.f32.mrf.mxu0
    %224 = vdwg.mxu0
    %v225 = vadd.f32 %v132, %v217
    %v226 = vadd.f32 %v133, %v222
    %227 = vst.msk [vmem:[#allocation2] sm:$0xff] %vm32, %v225
    %228 = vst.msk [vmem:[#allocation2 + $0x8] sm:$0xff] %vm32, %v226
    // Predicated region
    $region18: #{feed_forward.1} parent=1 // pred_check
      %p229 = pneg %p15
    $region19: #{feed_forward.1} parent=1 // pred_check_branch
      %231 = sbr.rel (%p229) target = $region21
    $region20: #{feed_forward.1} parent=1 // pred_region
      %v232 = vld [vmem:[#allocation2] sm:$0xff]
      %v233 = vld [vmem:[#allocation2 + $0x8] sm:$0xff]
      %234 = vst.msk [vmem:[#allocation3] sm:$0xff] %vm32, %v232
      %235 = vst.msk [vmem:[#allocation3 + $0x8] sm:$0xff] %vm32, %v233
    $region21: #{feed_forward.1} parent=1 // pred_fallthru
      _
    // Predicated region
    $region22: #{feed_forward.1} parent=1 // pred_check
      _
    $region23: #{feed_forward.1} parent=1 // pred_check_branch
      %237 = sbr.rel (0) target = $region25
    $region24: #{feed_forward.1} parent=1 // pred_region
      %s239 = ssub.s32 256, 256
      %240 = vsyncadd [#allocation4], %s239
      %s241 = sshll.u32 [#allocation3], 4
      %s242 = int_to_ptr.vmem [resolvable:$true] %s241
      %247 = dma.vmem_to_hbm [thread:$0]  %s242, 256, %s3, [#allocation4], 128, 128, 8
    $region25: #{feed_forward.1} parent=1 // pred_fallthru
      _
    // Predicated region
    $region26: #{feed_forward.1} parent=1 // pred_check
      _
    $region27: #{feed_forward.1} parent=1 // pred_check_branch
      %249 = sbr.rel (0) target = $region29
    $region28: #{feed_forward.1} parent=1 // pred_region
      %250 = dma.done [#allocation4], 256
    $region29: #{feed_forward.1} parent=1 // pred_fallthru
      _
    %251 = vsyncpa [#allocation4], 1

</llo_original>
